<compile_context>
chip_gen: v7x
topology: tpu7x:2x2x1
jax: 0.10.0
libtpu: 0.0.40
codegen_flags: <defaults>
</compile_context>

<pallas_src>
import jax
import jax.numpy as jnp
from jax.experimental import pallas as pl
from jax.experimental.pallas import tpu as pltpu


def _round_up(x, m):
    return ((x + m - 1) // m) * m


# ----------------------------- kernel -----------------------------

def lad_kernel(
    # activations (mxu_dtype); sequence axes pre-flattened host-side: [TB, L*dim]
    v_ref, a_ref, t_ref, p_ref,
    # encoder params: W [in, out] mxu_dtype (1/L folded + L-tiled rows), b [1, out] f32
    w_ae, b_ae,     # a_flat -> [al | aa]   ([L_a*a_dim, 2h])
    w_te, b_te,     # t_flat -> [tl | ta]   ([L_t*t_dim, 2h])
    w_pe, b_pe,     # p_flat -> ph          ([L_p*t_dim, h])
    w_ve, b_ve,     # v      -> vh          ([v_dim, h])
    # decoder + fusion weights split per hidden row-block (no in-kernel concat)
    w_ad, w_td, w_pd, w_vd,   # [2h,out_pad], [2h,out_pad], [h,out_pad], [h,out_pad]
    b_d,                      # [1, out_pad] f32
    # output slab [TB, out_pad] = [fusion | ra | rt | rp | rv | 0-pad]
    out_ref,
):
    f32 = jnp.float32
    mxu = w_ad.dtype

    def enc(x_ref, w_ref, b_ref):
        # mean(1) is already folded into w_ref (1/L scale + L-tiled rows), so the
        # encoder is a single MXU matmul; bias add + relu stay in f32 (one pass).
        y = jnp.dot(x_ref[...], w_ref[...], preferred_element_type=f32)
        return jax.nn.relu(y + b_ref[...])

    h_a = enc(a_ref, w_ae, b_ae)   # [TB, 2h] = [al | aa]
    h_t = enc(t_ref, w_te, b_te)   # [TB, 2h] = [tl | ta]
    h_p = enc(p_ref, w_pe, b_pe)   # [TB, h]  = ph
    h_v = enc(v_ref, w_ve, b_ve)   # [TB, h]  = vh

    # Block-sparse decoder + fusion head as four dense row-block dots accumulated
    # in f32 -> no lane concatenation of the (64/64/32/32-wide) hidden states.
    slab = (
        jnp.dot(h_a.astype(mxu), w_ad[...], preferred_element_type=f32)
        + jnp.dot(h_t.astype(mxu), w_td[...], preferred_element_type=f32)
        + jnp.dot(h_p.astype(mxu), w_pd[...], preferred_element_type=f32)
        + jnp.dot(h_v.astype(mxu), w_vd[...], preferred_element_type=f32)
        + b_d[...]
    )
    out_ref[...] = slab.astype(out_ref.dtype)   # one lane-dense (128-wide) store


# ----------------------------- host-side packing -----------------------------

def pack_lad_params(params, *, a_dim, t_dim, v_dim, L_a, L_t, L_p, out_pad, mxu_dtype):
    f32 = jnp.float32
    h = params["sl_w"].shape[1]

    # Encoders: paired heads packed along lanes; 1/L folded; rows tiled L times so
    # a [B, L*dim] input reshape turns mean(1) into part of the MXU contraction.
    w_ae = jnp.tile(jnp.concatenate([params["al_w"], params["aa_w"]], 1) / L_a, (L_a, 1))
    b_ae = jnp.concatenate([params["al_b"], params["aa_b"]], 1)
    w_te = jnp.tile(jnp.concatenate([params["tl_w"], params["ta_w"]], 1) / L_t, (L_t, 1))
    b_te = jnp.concatenate([params["tl_b"], params["ta_b"]], 1)
    w_pe = jnp.tile(params["sl_w"] / L_p, (L_p, 1))
    b_pe = params["sl_b"]
    w_ve = params["ve_w"]
    b_ve = params["ve_b"]

    # Decoders + fusion head split into per-hidden-block row slabs.
    # Output column layout: [fusion(1) | ra(a_dim) | rt(t_dim) | rp(t_dim) | rv(v_dim) | 0-pad].
    w_ad = jnp.zeros((2 * h, out_pad), f32)   # fed by h_a = [al | aa]
    w_td = jnp.zeros((2 * h, out_pad), f32)   # fed by h_t = [tl | ta]
    w_pd = jnp.zeros((h, out_pad), f32)       # fed by ph
    w_vd = jnp.zeros((h, out_pad), f32)       # fed by vh
    b_d = jnp.zeros((1, out_pad), f32)

    # fusion(cat([vh, aa, ta])): fu_w rows 0:h -> vh, h:2h -> aa, 2h:3h -> ta.
    fu = params["fu_w"]                                   # [3h, 1]
    w_vd = w_vd.at[:, 0:1].set(fu[0:h])
    w_ad = w_ad.at[h:2 * h, 0:1].set(fu[h:2 * h])
    w_td = w_td.at[h:2 * h, 0:1].set(fu[2 * h:3 * h])
    b_d = b_d.at[:, 0:1].set(params["fu_b"])

    c = 1
    w_ad = w_ad.at[:, c:c + a_dim].set(params["ad_w"])    # ra from [al|aa]
    b_d = b_d.at[:, c:c + a_dim].set(params["ad_b"])
    c += a_dim
    w_td = w_td.at[:, c:c + t_dim].set(params["td_w"])    # rt from [tl|ta]
    b_d = b_d.at[:, c:c + t_dim].set(params["td_b"])
    c += t_dim
    w_pd = w_pd.at[:, c:c + t_dim].set(params["sd_w"])    # rp from ph
    b_d = b_d.at[:, c:c + t_dim].set(params["sd_b"])
    c += t_dim
    w_vd = w_vd.at[:, c:c + v_dim].set(params["vd_w"])    # rv from vh
    b_d = b_d.at[:, c:c + v_dim].set(params["vd_b"])

    md = mxu_dtype
    # MXU operands in mxu_dtype (bf16 by default); biases stay f32 (VPU adds in f32).
    return [
        w_ae.astype(md), b_ae.astype(f32),
        w_te.astype(md), b_te.astype(f32),
        w_pe.astype(md), b_pe.astype(f32),
        w_ve.astype(md), b_ve.astype(f32),
        w_ad.astype(md), w_td.astype(md), w_pd.astype(md), w_vd.astype(md),
        b_d.astype(f32),
    ]


# ----------------------------- wrapper -----------------------------

def _vmem_cap_bytes():
    # Generation-aware VMEM ceiling with ~1/8 headroom for compiler-internal
    # scratch (v5e/v6e: 128 MiB physical -> ~112 MiB; v7x: 64 MiB -> ~56 MiB).
    try:
        cap = int(pltpu.get_tpu_info().vmem_capacity_bytes)
    except Exception:
        cap = 64 * 2**20   # v7x-safe fallback
    return max(32 * 2**20, (cap * 7) // 8)


def lad_forward(v, a, t, p, params, *, mxu_dtype=jnp.bfloat16, out_dtype=None,
                batch_tile=2048):
    if out_dtype is None:
        out_dtype = mxu_dtype   # bf16 writeback halves output HBM traffic

    B = v.shape[0]
    L_a, a_dim = a.shape[1], a.shape[-1]
    L_t, t_dim = t.shape[1], t.shape[-1]
    L_p = p.shape[1]
    v_dim = v.shape[-1]

    out_cols = 1 + a_dim + 2 * t_dim + v_dim
    out_pad = _round_up(out_cols, 128)             # lane-dense output slab

    packed = pack_lad_params(
        params, a_dim=a_dim, t_dim=t_dim, v_dim=v_dim,
        L_a=L_a, L_t=L_t, L_p=L_p, out_pad=out_pad, mxu_dtype=mxu_dtype)

    # Flatten sequence axes (contiguous reshape, free): mean(1) is now part of the
    # encoder matmul contraction (K: dim -> L*dim).
    a2 = a.reshape(B, L_a * a_dim)
    t2 = t.reshape(B, L_t * t_dim)
    p2 = p.reshape(B, L_p * t_dim)

    act_itemsize = jnp.dtype(mxu_dtype).itemsize
    out_itemsize = jnp.dtype(out_dtype).itemsize
    w_bytes = sum(int(x.size) * x.dtype.itemsize for x in packed)
    act_cols = v_dim + L_a * a_dim + L_t * t_dim + L_p * t_dim
    vmem_cap = _vmem_cap_bytes()

    def _need(tb):
        # double-buffered activation + output tiles, weights (counted 2x to be
        # safe against pipelining), plus a small fixed margin.
        return (2 * tb * (act_cols * act_itemsize + out_pad * out_itemsize)
                + 2 * w_bytes + (4 << 20))

    # Batch tile: multiple of 16 (bf16 sublane packing); shrink to fit VMEM cap.
    TB = max(16, _round_up(min(batch_tile, B), 16))
    while _need(TB) > vmem_cap and TB > 16:
        TB = max(16, _round_up(TB // 2, 16))

    PB = _round_up(B, TB)
    n_steps = PB // TB

    def pad_rows(x):
        if x.shape[0] != PB:
            x = jnp.pad(x, ((0, PB - x.shape[0]), (0, 0)))
        return x.astype(mxu_dtype)

    v_p, a_p, t_p, p_p = pad_rows(v), pad_rows(a2), pad_rows(t2), pad_rows(p2)

    act_specs = [
        pl.BlockSpec((TB, v_dim), lambda i: (i, 0)),
        pl.BlockSpec((TB, L_a * a_dim), lambda i: (i, 0)),
        pl.BlockSpec((TB, L_t * t_dim), lambda i: (i, 0)),
        pl.BlockSpec((TB, L_p * t_dim), lambda i: (i, 0)),
    ]
    # Weights/biases: full-array blocks with constant index_map -> VMEM-resident
    # across all batch tiles (no per-step re-fetch).
    w_specs = [pl.BlockSpec(w.shape, lambda i: (0, 0)) for w in packed]
    out_spec = pl.BlockSpec((TB, out_pad), lambda i: (i, 0))

    vmem_limit = int(min(vmem_cap, max(32 << 20, _need(TB))))

    slab = pl.pallas_call(
        lad_kernel,
        out_shape=jax.ShapeDtypeStruct((PB, out_pad), out_dtype),
        grid=(n_steps,),
        in_specs=act_specs + w_specs,
        out_specs=out_spec,
        compiler_params=pltpu.CompilerParams(
            dimension_semantics=("parallel",),   # batch tiles shard across TCs
            vmem_limit_bytes=vmem_limit,
        ),
    )(v_p, a_p, t_p, p_p, *packed)

    # Slice the lane-dense slab back into the five module outputs.
    slab = slab[:B]
    out = slab[:, 0:1]
    c = 1
    ra = slab[:, c:c + a_dim]; c += a_dim
    rt = slab[:, c:c + t_dim]; c += t_dim
    rp = slab[:, c:c + t_dim]; c += t_dim
    rv = slab[:, c:c + v_dim]
    return out, ra, rt, rp, rv


# ----------------------------- parameter setup -----------------------------

def _xavier_linear(key, in_dim, out_dim):
    # xavier_normal_ on a [out, in] torch weight == std sqrt(2/(in+out));
    # stored as [in, out] for x @ W.
    kw, kb = jax.random.split(key)
    std = (2.0 / (in_dim + out_dim)) ** 0.5
    w = std * jax.random.normal(kw, (in_dim, out_dim), dtype=jnp.float32)
    b = 0.05 * jax.random.normal(kb, (1, out_dim), dtype=jnp.float32)
    return w, b


def make_params(key, a_dim, t_dim, v_dim, h_dim):
    shapes = {
        "sl": (t_dim, h_dim), "al": (a_dim, h_dim), "aa": (a_dim, h_dim),
        "tl": (t_dim, h_dim), "ta": (t_dim, h_dim), "ve": (v_dim, h_dim),
        "ad": (2 * h_dim, a_dim), "td": (2 * h_dim, t_dim),
        "sd": (h_dim, t_dim), "vd": (h_dim, v_dim),
        "fu": (3 * h_dim, 1),
    }
    params = {}
    keys = jax.random.split(key, len(shapes))
    for k, (name, (din, dout)) in zip(keys, shapes.items()):
        w, b = _xavier_linear(k, din, dout)
        params[name + "_w"] = w
        params[name + "_b"] = b
    return params


# ------------------ pure-JAX reference (PyTorch-faithful, f32) ------------------

def lad_reference(v, a, t, p, params):
    def lin(x, w, b):
        return x @ w + b

    def enc(x, w, b):
        return jax.nn.relu(lin(x, w, b))

    a_m, t_m, p_m = a.mean(1), t.mean(1), p.mean(1)
    al = enc(a_m, params["al_w"], params["al_b"])
    aa = enc(a_m, params["aa_w"], params["aa_b"])
    tl = enc(t_m, params["tl_w"], params["tl_b"])
    ta = enc(t_m, params["ta_w"], params["ta_b"])
    vh = enc(v,   params["ve_w"], params["ve_b"])
    ph = enc(p_m, params["sl_w"], params["sl_b"])
    ra = lin(jnp.concatenate([al, aa], -1), params["ad_w"], params["ad_b"])
    rt = lin(jnp.concatenate([tl, ta], -1), params["td_w"], params["td_b"])
    rp = lin(ph, params["sd_w"], params["sd_b"])
    rv = lin(vh, params["vd_w"], params["vd_b"])
    out = lin(jnp.concatenate([vh, aa, ta], -1), params["fu_w"], params["fu_b"])
    return out, ra, rt, rp, rv


if __name__ == "__main__":
    B, L = 2, 8
    a_dim, t_dim, v_dim, h_dim = 20, 24, 16, 32

    key = jax.random.PRNGKey(0)
    k_v, k_a, k_t, k_p, k_par = jax.random.split(key, 5)

    v = jax.random.normal(k_v, (B, v_dim), dtype=jnp.float32)
    a = jax.random.normal(k_a, (B, L, a_dim), dtype=jnp.float32)
    t = jax.random.normal(k_t, (B, L, t_dim), dtype=jnp.float32)
    p = jax.random.normal(k_p, (B, L, t_dim), dtype=jnp.float32)

    params = make_params(k_par, a_dim, t_dim, v_dim, h_dim)
    refs = lad_reference(v, a, t, p, params)

    # f32 MXU path with f32 output: tight check against the PyTorch-faithful reference.
    outs_f32 = jax.block_until_ready(
        lad_forward(v, a, t, p, params, mxu_dtype=jnp.float32, out_dtype=jnp.float32))
    for o, r in zip(outs_f32, refs):
        assert o.shape == r.shape, (o.shape, r.shape)
        assert jnp.allclose(o, r, rtol=1e-3, atol=1e-3)

    # bf16 MXU path (default: halves activation DMA + output writeback bytes,
    # f32 accumulation / f32 elementwise): loose tolerance.
    outs_bf16 = jax.block_until_ready(
        lad_forward(v, a, t, p, params, mxu_dtype=jnp.bfloat16))
    for o, r in zip(outs_bf16, refs):
        assert o.shape == r.shape, (o.shape, r.shape)
        assert jnp.allclose(o.astype(jnp.float32), r, rtol=5e-2, atol=5e-2)

    print("KERNEL_OK")
</pallas_src>

<mosaic_0001>
module attributes {stable_mosaic.version = 11 : i64} {
  func.func @lad_kernel(%arg0: i32, %arg1: memref<16x16xf32, #tpu.memory_space<vmem>>, %arg2: memref<16x160xf32, #tpu.memory_space<vmem>>, %arg3: memref<16x192xf32, #tpu.memory_space<vmem>>, %arg4: memref<16x192xf32, #tpu.memory_space<vmem>>, %arg5: memref<160x64xf32, #tpu.memory_space<vmem>>, %arg6: memref<1x64xf32, #tpu.memory_space<vmem>>, %arg7: memref<192x64xf32, #tpu.memory_space<vmem>>, %arg8: memref<1x64xf32, #tpu.memory_space<vmem>>, %arg9: memref<192x32xf32, #tpu.memory_space<vmem>>, %arg10: memref<1x32xf32, #tpu.memory_space<vmem>>, %arg11: memref<16x32xf32, #tpu.memory_space<vmem>>, %arg12: memref<1x32xf32, #tpu.memory_space<vmem>>, %arg13: memref<64x128xf32, #tpu.memory_space<vmem>>, %arg14: memref<64x128xf32, #tpu.memory_space<vmem>>, %arg15: memref<32x128xf32, #tpu.memory_space<vmem>>, %arg16: memref<32x128xf32, #tpu.memory_space<vmem>>, %arg17: memref<1x128xf32, #tpu.memory_space<vmem>>, %arg18: memref<16x128xf32, #tpu.memory_space<vmem>>) attributes {dimension_semantics = [#tpu.dimension_semantics<parallel>], iteration_bounds = array<i64: 1>, scalar_prefetch = 0 : i64, scratch_operands = 0 : i64, tpu.core_type = #tpu.core_type<tc>, window_params = [{transform_indices = @transform_0, window_bounds = array<i64: 16, 16>}, {transform_indices = @transform_1, window_bounds = array<i64: 16, 160>}, {transform_indices = @transform_2, window_bounds = array<i64: 16, 192>}, {transform_indices = @transform_3, window_bounds = array<i64: 16, 192>}, {pipeline_mode = #tpu.pipeline_mode<synchronous>, transform_indices = @transform_4, window_bounds = array<i64: 160, 64>}, {pipeline_mode = #tpu.pipeline_mode<synchronous>, transform_indices = @transform_5, window_bounds = array<i64: 1, 64>}, {pipeline_mode = #tpu.pipeline_mode<synchronous>, transform_indices = @transform_6, window_bounds = array<i64: 192, 64>}, {pipeline_mode = #tpu.pipeline_mode<synchronous>, transform_indices = @transform_7, window_bounds = array<i64: 1, 64>}, {pipeline_mode = #tpu.pipeline_mode<synchronous>, transform_indices = @transform_8, window_bounds = array<i64: 192, 32>}, {pipeline_mode = #tpu.pipeline_mode<synchronous>, transform_indices = @transform_9, window_bounds = array<i64: 1, 32>}, {pipeline_mode = #tpu.pipeline_mode<synchronous>, transform_indices = @transform_10, window_bounds = array<i64: 16, 32>}, {pipeline_mode = #tpu.pipeline_mode<synchronous>, transform_indices = @transform_11, window_bounds = array<i64: 1, 32>}, {pipeline_mode = #tpu.pipeline_mode<synchronous>, transform_indices = @transform_12, window_bounds = array<i64: 64, 128>}, {pipeline_mode = #tpu.pipeline_mode<synchronous>, transform_indices = @transform_13, window_bounds = array<i64: 64, 128>}, {pipeline_mode = #tpu.pipeline_mode<synchronous>, transform_indices = @transform_14, window_bounds = array<i64: 32, 128>}, {pipeline_mode = #tpu.pipeline_mode<synchronous>, transform_indices = @transform_15, window_bounds = array<i64: 32, 128>}, {pipeline_mode = #tpu.pipeline_mode<synchronous>, transform_indices = @transform_16, window_bounds = array<i64: 1, 128>}, {transform_indices = @transform_17, window_bounds = array<i64: 16, 128>}]} {
    %c0 = arith.constant 0 : index
    %c0_0 = arith.constant 0 : index
    %0 = vector.load %arg2[%c0, %c0_0] : memref<16x160xf32, #tpu.memory_space<vmem>>, vector<16x160xf32>
    %c0_1 = arith.constant 0 : index
    %c0_2 = arith.constant 0 : index
    %1 = vector.load %arg5[%c0_1, %c0_2] : memref<160x64xf32, #tpu.memory_space<vmem>>, vector<160x64xf32>
    %cst = arith.constant dense<0.000000e+00> : vector<16x64xf32>
    %2 = tpu.matmul %0, %1, %cst {dimension_numbers = #tpu.dot_dimension_numbers<[1], [0], [0], [1], [0, 0, 1, 1], [], []>} : vector<16x160xf32>, vector<160x64xf32>, vector<16x64xf32> -> vector<16x64xf32>
    %c0_3 = arith.constant 0 : index
    %c0_4 = arith.constant 0 : index
    %3 = vector.load %arg6[%c0_3, %c0_4] : memref<1x64xf32, #tpu.memory_space<vmem>>, vector<1x64xf32>
    %4 = vector.broadcast %3 : vector<1x64xf32> to vector<16x64xf32>
    %5 = arith.addf %2, %4 : vector<16x64xf32>
    %cst_5 = arith.constant 0.000000e+00 : f32
    %6 = vector.broadcast %cst_5 : f32 to vector<16x64xf32>
    %7 = arith.maximumf %5, %6 : vector<16x64xf32>
    %c0_6 = arith.constant 0 : index
    %c0_7 = arith.constant 0 : index
    %8 = vector.load %arg3[%c0_6, %c0_7] : memref<16x192xf32, #tpu.memory_space<vmem>>, vector<16x192xf32>
    %c0_8 = arith.constant 0 : index
    %c0_9 = arith.constant 0 : index
    %9 = vector.load %arg7[%c0_8, %c0_9] : memref<192x64xf32, #tpu.memory_space<vmem>>, vector<192x64xf32>
    %cst_10 = arith.constant dense<0.000000e+00> : vector<16x64xf32>
    %10 = tpu.matmul %8, %9, %cst_10 {dimension_numbers = #tpu.dot_dimension_numbers<[1], [0], [0], [1], [0, 0, 1, 1], [], []>} : vector<16x192xf32>, vector<192x64xf32>, vector<16x64xf32> -> vector<16x64xf32>
    %c0_11 = arith.constant 0 : index
    %c0_12 = arith.constant 0 : index
    %11 = vector.load %arg8[%c0_11, %c0_12] : memref<1x64xf32, #tpu.memory_space<vmem>>, vector<1x64xf32>
    %12 = vector.broadcast %11 : vector<1x64xf32> to vector<16x64xf32>
    %13 = arith.addf %10, %12 : vector<16x64xf32>
    %cst_13 = arith.constant 0.000000e+00 : f32
    %14 = vector.broadcast %cst_13 : f32 to vector<16x64xf32>
    %15 = arith.maximumf %13, %14 : vector<16x64xf32>
    %c0_14 = arith.constant 0 : index
    %c0_15 = arith.constant 0 : index
    %16 = vector.load %arg4[%c0_14, %c0_15] : memref<16x192xf32, #tpu.memory_space<vmem>>, vector<16x192xf32>
    %c0_16 = arith.constant 0 : index
    %c0_17 = arith.constant 0 : index
    %17 = vector.load %arg9[%c0_16, %c0_17] : memref<192x32xf32, #tpu.memory_space<vmem>>, vector<192x32xf32>
    %cst_18 = arith.constant dense<0.000000e+00> : vector<16x32xf32>
    %18 = tpu.matmul %16, %17, %cst_18 {dimension_numbers = #tpu.dot_dimension_numbers<[1], [0], [0], [1], [0, 0, 1, 1], [], []>} : vector<16x192xf32>, vector<192x32xf32>, vector<16x32xf32> -> vector<16x32xf32>
    %c0_19 = arith.constant 0 : index
    %c0_20 = arith.constant 0 : index
    %19 = vector.load %arg10[%c0_19, %c0_20] : memref<1x32xf32, #tpu.memory_space<vmem>>, vector<1x32xf32>
    %20 = vector.broadcast %19 : vector<1x32xf32> to vector<16x32xf32>
    %21 = arith.addf %18, %20 : vector<16x32xf32>
    %cst_21 = arith.constant 0.000000e+00 : f32
    %22 = vector.broadcast %cst_21 : f32 to vector<16x32xf32>
    %23 = arith.maximumf %21, %22 : vector<16x32xf32>
    %c0_22 = arith.constant 0 : index
    %c0_23 = arith.constant 0 : index
    %24 = vector.load %arg1[%c0_22, %c0_23] : memref<16x16xf32, #tpu.memory_space<vmem>>, vector<16x16xf32>
    %c0_24 = arith.constant 0 : index
    %c0_25 = arith.constant 0 : index
    %25 = vector.load %arg11[%c0_24, %c0_25] : memref<16x32xf32, #tpu.memory_space<vmem>>, vector<16x32xf32>
    %cst_26 = arith.constant dense<0.000000e+00> : vector<16x32xf32>
    %26 = tpu.matmul %24, %25, %cst_26 {dimension_numbers = #tpu.dot_dimension_numbers<[1], [0], [0], [1], [0, 0, 1, 1], [], []>} : vector<16x16xf32>, vector<16x32xf32>, vector<16x32xf32> -> vector<16x32xf32>
    %c0_27 = arith.constant 0 : index
    %c0_28 = arith.constant 0 : index
    %27 = vector.load %arg12[%c0_27, %c0_28] : memref<1x32xf32, #tpu.memory_space<vmem>>, vector<1x32xf32>
    %28 = vector.broadcast %27 : vector<1x32xf32> to vector<16x32xf32>
    %29 = arith.addf %26, %28 : vector<16x32xf32>
    %cst_29 = arith.constant 0.000000e+00 : f32
    %30 = vector.broadcast %cst_29 : f32 to vector<16x32xf32>
    %31 = arith.maximumf %29, %30 : vector<16x32xf32>
    %c0_30 = arith.constant 0 : index
    %c0_31 = arith.constant 0 : index
    %32 = vector.load %arg13[%c0_30, %c0_31] : memref<64x128xf32, #tpu.memory_space<vmem>>, vector<64x128xf32>
    %cst_32 = arith.constant dense<0.000000e+00> : vector<16x128xf32>
    %33 = tpu.matmul %7, %32, %cst_32 {dimension_numbers = #tpu.dot_dimension_numbers<[1], [0], [0], [1], [0, 0, 1, 1], [], []>} : vector<16x64xf32>, vector<64x128xf32>, vector<16x128xf32> -> vector<16x128xf32>
    %c0_33 = arith.constant 0 : index
    %c0_34 = arith.constant 0 : index
    %34 = vector.load %arg14[%c0_33, %c0_34] : memref<64x128xf32, #tpu.memory_space<vmem>>, vector<64x128xf32>
    %cst_35 = arith.constant dense<0.000000e+00> : vector<16x128xf32>
    %35 = tpu.matmul %15, %34, %cst_35 {dimension_numbers = #tpu.dot_dimension_numbers<[1], [0], [0], [1], [0, 0, 1, 1], [], []>} : vector<16x64xf32>, vector<64x128xf32>, vector<16x128xf32> -> vector<16x128xf32>
    %36 = arith.addf %33, %35 : vector<16x128xf32>
    %c0_36 = arith.constant 0 : index
    %c0_37 = arith.constant 0 : index
    %37 = vector.load %arg15[%c0_36, %c0_37] : memref<32x128xf32, #tpu.memory_space<vmem>>, vector<32x128xf32>
    %cst_38 = arith.constant dense<0.000000e+00> : vector<16x128xf32>
    %38 = tpu.matmul %23, %37, %cst_38 {dimension_numbers = #tpu.dot_dimension_numbers<[1], [0], [0], [1], [0, 0, 1, 1], [], []>} : vector<16x32xf32>, vector<32x128xf32>, vector<16x128xf32> -> vector<16x128xf32>
    %39 = arith.addf %36, %38 : vector<16x128xf32>
    %c0_39 = arith.constant 0 : index
    %c0_40 = arith.constant 0 : index
    %40 = vector.load %arg16[%c0_39, %c0_40] : memref<32x128xf32, #tpu.memory_space<vmem>>, vector<32x128xf32>
    %cst_41 = arith.constant dense<0.000000e+00> : vector<16x128xf32>
    %41 = tpu.matmul %31, %40, %cst_41 {dimension_numbers = #tpu.dot_dimension_numbers<[1], [0], [0], [1], [0, 0, 1, 1], [], []>} : vector<16x32xf32>, vector<32x128xf32>, vector<16x128xf32> -> vector<16x128xf32>
    %42 = arith.addf %39, %41 : vector<16x128xf32>
    %c0_42 = arith.constant 0 : index
    %c0_43 = arith.constant 0 : index
    %43 = vector.load %arg17[%c0_42, %c0_43] : memref<1x128xf32, #tpu.memory_space<vmem>>, vector<1x128xf32>
    %44 = vector.broadcast %43 : vector<1x128xf32> to vector<16x128xf32>
    %45 = arith.addf %42, %44 : vector<16x128xf32>
    %c0_44 = arith.constant 0 : index
    %c0_45 = arith.constant 0 : index
    %46 = vector.load %arg18[%c0_44, %c0_45] : memref<16x128xf32, #tpu.memory_space<vmem>>, vector<16x128xf32>
    tpu.vector_store %arg18[%c0_44, %c0_45], %45 {strides = array<i32>} : memref<16x128xf32, #tpu.memory_space<vmem>>, vector<16x128xf32>,
    return
  }
  func.func @transform_0(%arg0: i32) -> (i32, i32) {
    %c0_i32 = arith.constant 0 : i32
    %c0_i32_0 = arith.constant 0 : i32
    return %arg0, %c0_i32 : i32, i32
  }
  func.func @transform_1(%arg0: i32) -> (i32, i32) {
    %c0_i32 = arith.constant 0 : i32
    %c0_i32_0 = arith.constant 0 : i32
    return %arg0, %c0_i32 : i32, i32
  }
  func.func @transform_2(%arg0: i32) -> (i32, i32) {
    %c0_i32 = arith.constant 0 : i32
    %c0_i32_0 = arith.constant 0 : i32
    return %arg0, %c0_i32 : i32, i32
  }
  func.func @transform_3(%arg0: i32) -> (i32, i32) {
    %c0_i32 = arith.constant 0 : i32
    %c0_i32_0 = arith.constant 0 : i32
    return %arg0, %c0_i32 : i32, i32
  }
  func.func @transform_4(%arg0: i32) -> (i32, i32) {
    %c0_i32 = arith.constant 0 : i32
    %c0_i32_0 = arith.constant 0 : i32
    %c0_i32_1 = arith.constant 0 : i32
    return %c0_i32, %c0_i32_0 : i32, i32
  }
  func.func @transform_5(%arg0: i32) -> (i32, i32) {
    %c0_i32 = arith.constant 0 : i32
    %c0_i32_0 = arith.constant 0 : i32
    %c0_i32_1 = arith.constant 0 : i32
    return %c0_i32, %c0_i32_0 : i32, i32
  }
  func.func @transform_6(%arg0: i32) -> (i32, i32) {
    %c0_i32 = arith.constant 0 : i32
    %c0_i32_0 = arith.constant 0 : i32
    %c0_i32_1 = arith.constant 0 : i32
    return %c0_i32, %c0_i32_0 : i32, i32
  }
  func.func @transform_7(%arg0: i32) -> (i32, i32) {
    %c0_i32 = arith.constant 0 : i32
    %c0_i32_0 = arith.constant 0 : i32
    %c0_i32_1 = arith.constant 0 : i32
    return %c0_i32, %c0_i32_0 : i32, i32
  }
  func.func @transform_8(%arg0: i32) -> (i32, i32) {
    %c0_i32 = arith.constant 0 : i32
    %c0_i32_0 = arith.constant 0 : i32
    %c0_i32_1 = arith.constant 0 : i32
    return %c0_i32, %c0_i32_0 : i32, i32
  }
  func.func @transform_9(%arg0: i32) -> (i32, i32) {
    %c0_i32 = arith.constant 0 : i32
    %c0_i32_0 = arith.constant 0 : i32
    %c0_i32_1 = arith.constant 0 : i32
    return %c0_i32, %c0_i32_0 : i32, i32
  }
  func.func @transform_10(%arg0: i32) -> (i32, i32) {
    %c0_i32 = arith.constant 0 : i32
    %c0_i32_0 = arith.constant 0 : i32
    %c0_i32_1 = arith.constant 0 : i32
    return %c0_i32, %c0_i32_0 : i32, i32
  }
  func.func @transform_11(%arg0: i32) -> (i32, i32) {
    %c0_i32 = arith.constant 0 : i32
    %c0_i32_0 = arith.constant 0 : i32
    %c0_i32_1 = arith.constant 0 : i32
    return %c0_i32, %c0_i32_0 : i32, i32
  }
  func.func @transform_12(%arg0: i32) -> (i32, i32) {
    %c0_i32 = arith.constant 0 : i32
    %c0_i32_0 = arith.constant 0 : i32
    %c0_i32_1 = arith.constant 0 : i32
    return %c0_i32, %c0_i32_0 : i32, i32
  }
  func.func @transform_13(%arg0: i32) -> (i32, i32) {
    %c0_i32 = arith.constant 0 : i32
    %c0_i32_0 = arith.constant 0 : i32
    %c0_i32_1 = arith.constant 0 : i32
    return %c0_i32, %c0_i32_0 : i32, i32
  }
  func.func @transform_14(%arg0: i32) -> (i32, i32) {
    %c0_i32 = arith.constant 0 : i32
    %c0_i32_0 = arith.constant 0 : i32
    %c0_i32_1 = arith.constant 0 : i32
    return %c0_i32, %c0_i32_0 : i32, i32
  }
  func.func @transform_15(%arg0: i32) -> (i32, i32) {
    %c0_i32 = arith.constant 0 : i32
    %c0_i32_0 = arith.constant 0 : i32
    %c0_i32_1 = arith.constant 0 : i32
    return %c0_i32, %c0_i32_0 : i32, i32
  }
  func.func @transform_16(%arg0: i32) -> (i32, i32) {
    %c0_i32 = arith.constant 0 : i32
    %c0_i32_0 = arith.constant 0 : i32
    %c0_i32_1 = arith.constant 0 : i32
    return %c0_i32, %c0_i32_0 : i32, i32
  }
  func.func @transform_17(%arg0: i32) -> (i32, i32) {
    %c0_i32 = arith.constant 0 : i32
    %c0_i32_0 = arith.constant 0 : i32
    return %arg0, %c0_i32 : i32, i32
  }
}

</mosaic_0001>

<llo_original>
// kernel: tpu_custom_call.1
$region0: #{tpu_custom_call.1}
  #allocation0 [shape = 'u32[]', space=smem, size = 0x4, offset = 0x4, fixed_abs, tag = 'smem constant byte address 0x4 - core index']
  #allocation1 [shape = 'u32[144,128]{1,0:T(1,128)}', space=vmem, size = 0x12000, scoped, tag = 'internal scratch']
  %s0 = inlined_call_operand.vmem [shape: f32[16,16], index: 0, kind: input, shape index: {}]
  %s1 = inlined_call_operand.vmem [shape: f32[16,160], index: 1, kind: input, shape index: {}]
  %s2 = inlined_call_operand.vmem [shape: f32[16,192], index: 2, kind: input, shape index: {}]
  %s3 = inlined_call_operand.vmem [shape: f32[16,192], index: 3, kind: input, shape index: {}]
  %s4 = inlined_call_operand.vmem [shape: f32[160,64], index: 4, kind: input, shape index: {}]
  %s5 = inlined_call_operand.vmem [shape: f32[1,64], index: 5, kind: input, shape index: {}]
  %s6 = inlined_call_operand.vmem [shape: f32[192,64], index: 6, kind: input, shape index: {}]
  %s7 = inlined_call_operand.vmem [shape: f32[1,64], index: 7, kind: input, shape index: {}]
  %s8 = inlined_call_operand.vmem [shape: f32[192,32], index: 8, kind: input, shape index: {}]
  %s9 = inlined_call_operand.vmem [shape: f32[1,32], index: 9, kind: input, shape index: {}]
  %s10 = inlined_call_operand.vmem [shape: f32[16,32], index: 10, kind: input, shape index: {}]
  %s11 = inlined_call_operand.vmem [shape: f32[1,32], index: 11, kind: input, shape index: {}]
  %s12 = inlined_call_operand.vmem [shape: f32[64,128], index: 12, kind: input, shape index: {}]
  %s13 = inlined_call_operand.vmem [shape: f32[64,128], index: 13, kind: input, shape index: {}]
  %s14 = inlined_call_operand.vmem [shape: f32[32,128], index: 14, kind: input, shape index: {}]
  %s15 = inlined_call_operand.vmem [shape: f32[32,128], index: 15, kind: input, shape index: {}]
  %s16 = inlined_call_operand.vmem [shape: f32[1,128], index: 16, kind: input, shape index: {}]
  %s17 = inlined_call_operand.hbm [shape: f32[16,128], index: 17, kind: output, shape index: {}]
  %s18 = sld [smem:[#allocation0]]
  $region78: #{tpu_custom_call.1} parent=0
    _
  %s20 = ssub.s32 1, %s18
  %s21 = scalar_select 0, %s20, %s18
  $region1: #{tpu_custom_call.1} parent=0
    #allocation2 [shape = 'u8[8192]{0}', space=vmem, size = 0x2000, scoped, tag = 'output window, operand 0, single buffered']
    #allocation3 [shape = 's32[1]{0}', space=sflag, size = 0x4, scoped, tag = 'scoped memory for tpu_custom_call.1']
    %22 = vsyncpa [#allocation3], 0
    // Predicated region
    $region2: #{tpu_custom_call.1} parent=1 // pred_check
      _
    $region3: #{tpu_custom_call.1} parent=1 // pred_check_branch
      %24 = sbr.rel (0) target = $region5
    $region4: #{tpu_custom_call.1} parent=1 // pred_region
      _
    $region5: #{tpu_custom_call.1} parent=1 // pred_fallthru
      _
    // Predicated region
    $region6: #{tpu_custom_call.1} parent=1 // pred_check
      _
    $region7: #{tpu_custom_call.1} parent=1 // pred_check_branch
      %26 = sbr.rel (0) target = $region9
    $region8: #{tpu_custom_call.1} parent=1 // pred_region
      _
    $region9: #{tpu_custom_call.1} parent=1 // pred_fallthru
      _
    // Predicated region
    $region10: #{tpu_custom_call.1} parent=1 // pred_check
      _
    $region11: #{tpu_custom_call.1} parent=1 // pred_check_branch
      %28 = sbr.rel (0) target = $region13
    $region12: #{tpu_custom_call.1} parent=1 // pred_region
      _
    $region13: #{tpu_custom_call.1} parent=1 // pred_fallthru
      _
    // Predicated region
    $region14: #{tpu_custom_call.1} parent=1 // pred_check
      _
    $region15: #{tpu_custom_call.1} parent=1 // pred_check_branch
      %30 = sbr.rel (0) target = $region17
    $region16: #{tpu_custom_call.1} parent=1 // pred_region
      _
    $region17: #{tpu_custom_call.1} parent=1 // pred_fallthru
      _
    // Predicated region
    $region18: #{tpu_custom_call.1} parent=1 // pred_check
      _
    $region19: #{tpu_custom_call.1} parent=1 // pred_check_branch
      %32 = sbr.rel (0) target = $region21
    $region20: #{tpu_custom_call.1} parent=1 // pred_region
      _
    $region21: #{tpu_custom_call.1} parent=1 // pred_fallthru
      _
    // Predicated region
    $region22: #{tpu_custom_call.1} parent=1 // pred_check
      _
    $region23: #{tpu_custom_call.1} parent=1 // pred_check_branch
      %34 = sbr.rel (0) target = $region25
    $region24: #{tpu_custom_call.1} parent=1 // pred_region
      _
    $region25: #{tpu_custom_call.1} parent=1 // pred_fallthru
      _
    // Predicated region
    $region26: #{tpu_custom_call.1} parent=1 // pred_check
      _
    $region27: #{tpu_custom_call.1} parent=1 // pred_check_branch
      %36 = sbr.rel (0) target = $region29
    $region28: #{tpu_custom_call.1} parent=1 // pred_region
      _
    $region29: #{tpu_custom_call.1} parent=1 // pred_fallthru
      _
    // Predicated region
    $region30: #{tpu_custom_call.1} parent=1 // pred_check
      _
    $region31: #{tpu_custom_call.1} parent=1 // pred_check_branch
      %38 = sbr.rel (0) target = $region33
    $region32: #{tpu_custom_call.1} parent=1 // pred_region
      _
    $region33: #{tpu_custom_call.1} parent=1 // pred_fallthru
      _
    // Predicated region
    $region34: #{tpu_custom_call.1} parent=1 // pred_check
      _
    $region35: #{tpu_custom_call.1} parent=1 // pred_check_branch
      %40 = sbr.rel (0) target = $region37
    $region36: #{tpu_custom_call.1} parent=1 // pred_region
      _
    $region37: #{tpu_custom_call.1} parent=1 // pred_fallthru
      _
    // Predicated region
    $region38: #{tpu_custom_call.1} parent=1 // pred_check
      _
    $region39: #{tpu_custom_call.1} parent=1 // pred_check_branch
      %42 = sbr.rel (0) target = $region41
    $region40: #{tpu_custom_call.1} parent=1 // pred_region
      _
    $region41: #{tpu_custom_call.1} parent=1 // pred_fallthru
      _
    // Predicated region
    $region42: #{tpu_custom_call.1} parent=1 // pred_check
      _
    $region43: #{tpu_custom_call.1} parent=1 // pred_check_branch
      %44 = sbr.rel (0) target = $region45
    $region44: #{tpu_custom_call.1} parent=1 // pred_region
      _
    $region45: #{tpu_custom_call.1} parent=1 // pred_fallthru
      _
    // Predicated region
    $region46: #{tpu_custom_call.1} parent=1 // pred_check
      _
    $region47: #{tpu_custom_call.1} parent=1 // pred_check_branch
      %46 = sbr.rel (0) target = $region49
    $region48: #{tpu_custom_call.1} parent=1 // pred_region
      _
    $region49: #{tpu_custom_call.1} parent=1 // pred_fallthru
      _
    // Predicated region
    $region50: #{tpu_custom_call.1} parent=1 // pred_check
      _
    $region51: #{tpu_custom_call.1} parent=1 // pred_check_branch
      %48 = sbr.rel (0) target = $region53
    $region52: #{tpu_custom_call.1} parent=1 // pred_region
      _
    $region53: #{tpu_custom_call.1} parent=1 // pred_fallthru
      _
    // Predicated region
    $region54: #{tpu_custom_call.1} parent=1 // pred_check
      _
    $region55: #{tpu_custom_call.1} parent=1 // pred_check_branch
      %50 = sbr.rel (0) target = $region57
    $region56: #{tpu_custom_call.1} parent=1 // pred_region
      _
    $region57: #{tpu_custom_call.1} parent=1 // pred_fallthru
      _
    // Predicated region
    $region58: #{tpu_custom_call.1} parent=1 // pred_check
      _
    $region59: #{tpu_custom_call.1} parent=1 // pred_check_branch
      %52 = sbr.rel (0) target = $region61
    $region60: #{tpu_custom_call.1} parent=1 // pred_region
      _
    $region61: #{tpu_custom_call.1} parent=1 // pred_fallthru
      _
    // Predicated region
    $region62: #{tpu_custom_call.1} parent=1 // pred_check
      _
    $region63: #{tpu_custom_call.1} parent=1 // pred_check_branch
      %54 = sbr.rel (0) target = $region65
    $region64: #{tpu_custom_call.1} parent=1 // pred_region
      _
    $region65: #{tpu_custom_call.1} parent=1 // pred_fallthru
      _
    // Predicated region
    $region66: #{tpu_custom_call.1} parent=1 // pred_check
      _
    $region67: #{tpu_custom_call.1} parent=1 // pred_check_branch
      %56 = sbr.rel (0) target = $region69
    $region68: #{tpu_custom_call.1} parent=1 // pred_region
      _
    $region69: #{tpu_custom_call.1} parent=1 // pred_fallthru
      _
    %v57 = vld [vmem:[%s1] sm:$0xff]
    %v58 = vld [vmem:[%s1 + $0x8] sm:$0xff]
    %v59 = vld [vmem:[%s1 + $0x10] sm:$0xff]
    %v60 = vld [vmem:[%s1 + $0x18] sm:$0xff]
    %v61 = vld [vmem:[%s4] sm:$0xff]
    %v62 = vld [vmem:[%s4 + $0x8] sm:$0xff]
    %v63 = vld [vmem:[%s4 + $0x10] sm:$0xff]
    %v64 = vld [vmem:[%s4 + $0x18] sm:$0xff]
    %v65 = vld [vmem:[%s4 + $0x20] sm:$0xff]
    %v66 = vld [vmem:[%s4 + $0x28] sm:$0xff]
    %v67 = vld [vmem:[%s4 + $0x30] sm:$0xff]
    %v68 = vld [vmem:[%s4 + $0x38] sm:$0xff]
    %v69 = vld [vmem:[%s4 + $0x40] sm:$0xff]
    %v70 = vld [vmem:[%s4 + $0x48] sm:$0xff]
    %v71 = vld [vmem:[%s4 + $0x50] sm:$0xff]
    %v72 = vld [vmem:[%s4 + $0x58] sm:$0xff]
    %v73 = vld [vmem:[%s4 + $0x60] sm:$0xff]
    %v74 = vld [vmem:[%s4 + $0x68] sm:$0xff]
    %v75 = vld [vmem:[%s4 + $0x70] sm:$0xff]
    %v76 = vld [vmem:[%s4 + $0x78] sm:$0xff]
    %v77 = vld [vmem:[%s4 + $0x80] sm:$0xff]
    %v78 = vld [vmem:[%s4 + $0x88] sm:$0xff]
    %v79 = vld [vmem:[%s4 + $0x90] sm:$0xff]
    %v80 = vld [vmem:[%s4 + $0x98] sm:$0xff]
    %v81 = vld [vmem:[%s5] sm:$0x1]
    %v83 = vlaneseq
    %v84 = vshrl.u32 %v83, 7
    %v85 = vsub.s32 0, %v84
    %v86 = vrot.slane %v81, %v85
    %vm88 = vcmask 261120
    %v90 = vsel %vm88, %v58, 0
    %v93 = vsel %vm88, %v60, 0
    %95 = vmatprep.subr.mxu0 0.0
    %96 = vmatpush1.msra.mxu0 %v61
    %97 = vmatprep.subr.mxu0 0.0
    %98 = vmatpush1.msra.mxu0 %v62
    %99 = vmatprep.subr.mxu0 0.0
    %100 = vmatpush1.msra.mxu0 %v63
    %101 = vmatprep.subr.mxu0 0.0
    %102 = vmatpush1.msra.mxu0 %v64
    %103 = vmatprep.subr.mxu0 0.0
    %104 = vmatpush1.msra.mxu0 %v65
    %105 = vmatprep.subr.mxu0 0.0
    %106 = vmatpush1.msra.mxu0 %v66
    %107 = vmatprep.subr.mxu0 0.0
    %108 = vmatpush1.msra.mxu0 %v67
    %109 = vmatprep.subr.mxu0 0.0
    %110 = vmatpush1.msra.mxu0 %v68
    %111 = vmatprep.subr.mxu0 0.0
    %112 = vmatpush1.msra.mxu0 %v69
    %113 = vmatprep.subr.mxu0 0.0
    %114 = vmatpush1.msra.mxu0 %v70
    %115 = vmatprep.subr.mxu0 0.0
    %116 = vmatpush1.msra.mxu0 %v71
    %117 = vmatprep.subr.mxu0 0.0
    %118 = vmatpush1.msra.mxu0 %v72
    %119 = vmatprep.subr.mxu0 0.0
    %120 = vmatpush1.msra.mxu0 %v73
    %121 = vmatprep.subr.mxu0 0.0
    %122 = vmatpush1.msra.mxu0 %v74
    %123 = vmatprep.subr.mxu0 0.0
    %124 = vmatpush1.msra.mxu0 %v75
    %125 = vmatprep.subr.mxu0 0.0
    %126 = vmatpush1.msra.mxu0 %v76
    %127 = vmatprep.subr.mxu0 0.0
    %128 = vmatpush1.msra.mxu0 %v77
    %129 = vmatprep.subr.mxu0 0.0
    %130 = vmatpush1.msra.mxu0 %v78
    %131 = vmatprep.subr.mxu0 0.0
    %132 = vmatpush1.msra.mxu0 %v79
    %133 = vmatprep.subr.mxu0 0.0
    %134 = vmatpush1.msra.mxu0 %v80
    %135 = vmatprep.subr.mxu0 0.0
    %136 = vmatpush1.msra.mxu0 0.0
    %137 = vmatprep.subr.mxu0 0.0
    %138 = vmatpush1.msra.mxu0 0.0
    %139 = vmatprep.subr.mxu0 0.0
    %140 = vmatpush1.msra.mxu0 0.0
    %141 = vmatprep.subr.mxu0 0.0
    %142 = vmatpush1.msra.mxu0 0.0
    %143 = vmatprep.subr.mxu0 0.0
    %144 = vmatpush1.msra.mxu0 0.0
    %145 = vmatprep.subr.mxu0 0.0
    %146 = vmatpush1.msra.mxu0 0.0
    %147 = vmatprep.subr.mxu0 0.0
    %148 = vmatpush1.msra.mxu0 0.0
    %149 = vmatprep.subr.mxu0 0.0
    %150 = vmatpush1.msra.mxu0 0.0
    %151 = vmatprep.subr.mxu0 0.0
    %152 = vmatpush1.msra.mxu0 0.0
    %153 = vmatprep.subr.mxu0 0.0
    %154 = vmatpush1.msra.mxu0 0.0
    %155 = vmatprep.subr.mxu0 0.0
    %156 = vmatpush1.msra.mxu0 0.0
    %157 = vmatprep.subr.mxu0 0.0
    %158 = vmatpush1.msra.mxu0 0.0
    %159 = vmatprep.mubr.f32.mxu0 %v90
    %160 = vmatmul.mubr.f32.gmra.mrb[0].mxu0 %v57
    %v161 = vpop.f32.mrb[0].mxu0
    %v162 = vadd.f32 %v86, %v161
    %v163 = vpop.f32.mrb[0].mxu0
    %164 = vmatprep.mubr.f32.mxu0 %v93
    %165 = vmatmul.mubr.f32.gmra.mrb[0].mxu0 %v59
    %v166 = vpop.f32.mrb[0].mxu0
    %v167 = vadd.f32 %v86, %v166
    %v168 = vpop.f32.mrb[0].mxu0
    %169 = vdwg.mxu0
    %v170 = vmax.f32 %v162, 0.0
    %v171 = vmax.f32 %v167, 0.0
    %v172 = vld [vmem:[%s2] sm:$0xff]
    %v173 = vld [vmem:[%s2 + $0x8] sm:$0xff]
    %v174 = vld [vmem:[%s2 + $0x10] sm:$0xff]
    %v175 = vld [vmem:[%s2 + $0x18] sm:$0xff]
    %v176 = vld [vmem:[%s6] sm:$0xff]
    %v177 = vld [vmem:[%s6 + $0x8] sm:$0xff]
    %v178 = vld [vmem:[%s6 + $0x10] sm:$0xff]
    %v179 = vld [vmem:[%s6 + $0x18] sm:$0xff]
    %v180 = vld [vmem:[%s6 + $0x20] sm:$0xff]
    %v181 = vld [vmem:[%s6 + $0x28] sm:$0xff]
    %v182 = vld [vmem:[%s6 + $0x30] sm:$0xff]
    %v183 = vld [vmem:[%s6 + $0x38] sm:$0xff]
    %v184 = vld [vmem:[%s6 + $0x40] sm:$0xff]
    %v185 = vld [vmem:[%s6 + $0x48] sm:$0xff]
    %v186 = vld [vmem:[%s6 + $0x50] sm:$0xff]
    %v187 = vld [vmem:[%s6 + $0x58] sm:$0xff]
    %v188 = vld [vmem:[%s6 + $0x60] sm:$0xff]
    %v189 = vld [vmem:[%s6 + $0x68] sm:$0xff]
    %v190 = vld [vmem:[%s6 + $0x70] sm:$0xff]
    %v191 = vld [vmem:[%s6 + $0x78] sm:$0xff]
    %v192 = vld [vmem:[%s6 + $0x80] sm:$0xff]
    %v193 = vld [vmem:[%s6 + $0x88] sm:$0xff]
    %v194 = vld [vmem:[%s6 + $0x90] sm:$0xff]
    %v195 = vld [vmem:[%s6 + $0x98] sm:$0xff]
    %v196 = vld [vmem:[%s6 + $0xa0] sm:$0xff]
    %v197 = vld [vmem:[%s6 + $0xa8] sm:$0xff]
    %v198 = vld [vmem:[%s6 + $0xb0] sm:$0xff]
    %v199 = vld [vmem:[%s6 + $0xb8] sm:$0xff]
    %v200 = vld [vmem:[%s7] sm:$0x1]
    %v202 = vlaneseq
    %v203 = vshrl.u32 %v202, 7
    %v204 = vsub.s32 0, %v203
    %v205 = vrot.slane %v200, %v204
    %vm207 = vcmask 523264
    %v209 = vsel %vm207, %v173, 0
    %v212 = vsel %vm207, %v175, 0
    %214 = vmatprep.subr.mxu0 0.0
    %215 = vmatpush1.msra.mxu0 %v176
    %216 = vmatprep.subr.mxu0 0.0
    %217 = vmatpush1.msra.mxu0 %v177
    %218 = vmatprep.subr.mxu0 0.0
    %219 = vmatpush1.msra.mxu0 %v178
    %220 = vmatprep.subr.mxu0 0.0
    %221 = vmatpush1.msra.mxu0 %v179
    %222 = vmatprep.subr.mxu0 0.0
    %223 = vmatpush1.msra.mxu0 %v180
    %224 = vmatprep.subr.mxu0 0.0
    %225 = vmatpush1.msra.mxu0 %v181
    %226 = vmatprep.subr.mxu0 0.0
    %227 = vmatpush1.msra.mxu0 %v182
    %228 = vmatprep.subr.mxu0 0.0
    %229 = vmatpush1.msra.mxu0 %v183
    %230 = vmatprep.subr.mxu0 0.0
    %231 = vmatpush1.msra.mxu0 %v184
    %232 = vmatprep.subr.mxu0 0.0
    %233 = vmatpush1.msra.mxu0 %v185
    %234 = vmatprep.subr.mxu0 0.0
    %235 = vmatpush1.msra.mxu0 %v186
    %236 = vmatprep.subr.mxu0 0.0
    %237 = vmatpush1.msra.mxu0 %v187
    %238 = vmatprep.subr.mxu0 0.0
    %239 = vmatpush1.msra.mxu0 %v188
    %240 = vmatprep.subr.mxu0 0.0
    %241 = vmatpush1.msra.mxu0 %v189
    %242 = vmatprep.subr.mxu0 0.0
    %243 = vmatpush1.msra.mxu0 %v190
    %244 = vmatprep.subr.mxu0 0.0
    %245 = vmatpush1.msra.mxu0 %v191
    %246 = vmatprep.subr.mxu0 0.0
    %247 = vmatpush1.msra.mxu0 %v192
    %248 = vmatprep.subr.mxu0 0.0
    %249 = vmatpush1.msra.mxu0 %v193
    %250 = vmatprep.subr.mxu0 0.0
    %251 = vmatpush1.msra.mxu0 %v194
    %252 = vmatprep.subr.mxu0 0.0
    %253 = vmatpush1.msra.mxu0 %v195
    %254 = vmatprep.subr.mxu0 0.0
    %255 = vmatpush1.msra.mxu0 %v196
    %256 = vmatprep.subr.mxu0 0.0
    %257 = vmatpush1.msra.mxu0 %v197
    %258 = vmatprep.subr.mxu0 0.0
    %259 = vmatpush1.msra.mxu0 %v198
    %260 = vmatprep.subr.mxu0 0.0
    %261 = vmatpush1.msra.mxu0 %v199
    %262 = vmatprep.subr.mxu0 0.0
    %263 = vmatpush1.msra.mxu0 0.0
    %264 = vmatprep.subr.mxu0 0.0
    %265 = vmatpush1.msra.mxu0 0.0
    %266 = vmatprep.subr.mxu0 0.0
    %267 = vmatpush1.msra.mxu0 0.0
    %268 = vmatprep.subr.mxu0 0.0
    %269 = vmatpush1.msra.mxu0 0.0
    %270 = vmatprep.subr.mxu0 0.0
    %271 = vmatpush1.msra.mxu0 0.0
    %272 = vmatprep.subr.mxu0 0.0
    %273 = vmatpush1.msra.mxu0 0.0
    %274 = vmatprep.subr.mxu0 0.0
    %275 = vmatpush1.msra.mxu0 0.0
    %276 = vmatprep.subr.mxu0 0.0
    %277 = vmatpush1.msra.mxu0 0.0
    %278 = vmatprep.mubr.f32.mxu0 %v209
    %279 = vmatmul.mubr.f32.gmra.mrb[0].mxu0 %v172
    %v280 = vpop.f32.mrb[0].mxu0
    %v281 = vadd.f32 %v205, %v280
    %v282 = vpop.f32.mrb[0].mxu0
    %283 = vmatprep.mubr.f32.mxu0 %v212
    %284 = vmatmul.mubr.f32.gmra.mrb[0].mxu0 %v174
    %v285 = vpop.f32.mrb[0].mxu0
    %v286 = vadd.f32 %v205, %v285
    %v287 = vpop.f32.mrb[0].mxu0
    %288 = vdwg.mxu0
    %v289 = vmax.f32 %v281, 0.0
    %v290 = vmax.f32 %v286, 0.0
    %v291 = vld [vmem:[%s3] sm:$0xff]
    %v292 = vld [vmem:[%s3 + $0x8] sm:$0xff]
    %v293 = vld [vmem:[%s3 + $0x10] sm:$0xff]
    %v294 = vld [vmem:[%s3 + $0x18] sm:$0xff]
    %v295 = vld [vmem:[%s8] sm:$0xff]
    %v296 = vld [vmem:[%s8 + $0x8] sm:$0xff]
    %v297 = vld [vmem:[%s8 + $0x10] sm:$0xff]
    %v298 = vld [vmem:[%s8 + $0x18] sm:$0xff]
    %v299 = vld [vmem:[%s8 + $0x20] sm:$0xff]
    %v300 = vld [vmem:[%s8 + $0x28] sm:$0xff]
    %v301 = vld [vmem:[%s8 + $0x30] sm:$0xff]
    %v302 = vld [vmem:[%s8 + $0x38] sm:$0xff]
    %v303 = vld [vmem:[%s8 + $0x40] sm:$0xff]
    %v304 = vld [vmem:[%s8 + $0x48] sm:$0xff]
    %v305 = vld [vmem:[%s8 + $0x50] sm:$0xff]
    %v306 = vld [vmem:[%s8 + $0x58] sm:$0xff]
    %v307 = vld [vmem:[%s8 + $0x60] sm:$0xff]
    %v308 = vld [vmem:[%s8 + $0x68] sm:$0xff]
    %v309 = vld [vmem:[%s8 + $0x70] sm:$0xff]
    %v310 = vld [vmem:[%s8 + $0x78] sm:$0xff]
    %v311 = vld [vmem:[%s8 + $0x80] sm:$0xff]
    %v312 = vld [vmem:[%s8 + $0x88] sm:$0xff]
    %v313 = vld [vmem:[%s8 + $0x90] sm:$0xff]
    %v314 = vld [vmem:[%s8 + $0x98] sm:$0xff]
    %v315 = vld [vmem:[%s8 + $0xa0] sm:$0xff]
    %v316 = vld [vmem:[%s8 + $0xa8] sm:$0xff]
    %v317 = vld [vmem:[%s8 + $0xb0] sm:$0xff]
    %v318 = vld [vmem:[%s8 + $0xb8] sm:$0xff]
    %v319 = vld [vmem:[%s9] sm:$0x1]
    %v321 = vlaneseq
    %v322 = vshrl.u32 %v321, 7
    %v323 = vsub.s32 0, %v322
    %v324 = vrot.slane %v319, %v323
    %v327 = vsel %vm207, %v292, 0
    %v330 = vsel %vm207, %v294, 0
    %332 = vmatprep.subr.mxu0 0.0
    %333 = vmatpush1.msra.mxu0 %v295
    %334 = vmatprep.subr.mxu0 0.0
    %335 = vmatpush1.msra.mxu0 %v296
    %336 = vmatprep.subr.mxu0 0.0
    %337 = vmatpush1.msra.mxu0 %v297
    %338 = vmatprep.subr.mxu0 0.0
    %339 = vmatpush1.msra.mxu0 %v298
    %340 = vmatprep.subr.mxu0 0.0
    %341 = vmatpush1.msra.mxu0 %v299
    %342 = vmatprep.subr.mxu0 0.0
    %343 = vmatpush1.msra.mxu0 %v300
    %344 = vmatprep.subr.mxu0 0.0
    %345 = vmatpush1.msra.mxu0 %v301
    %346 = vmatprep.subr.mxu0 0.0
    %347 = vmatpush1.msra.mxu0 %v302
    %348 = vmatprep.subr.mxu0 0.0
    %349 = vmatpush1.msra.mxu0 %v303
    %350 = vmatprep.subr.mxu0 0.0
    %351 = vmatpush1.msra.mxu0 %v304
    %352 = vmatprep.subr.mxu0 0.0
    %353 = vmatpush1.msra.mxu0 %v305
    %354 = vmatprep.subr.mxu0 0.0
    %355 = vmatpush1.msra.mxu0 %v306
    %356 = vmatprep.subr.mxu0 0.0
    %357 = vmatpush1.msra.mxu0 %v307
    %358 = vmatprep.subr.mxu0 0.0
    %359 = vmatpush1.msra.mxu0 %v308
    %360 = vmatprep.subr.mxu0 0.0
    %361 = vmatpush1.msra.mxu0 %v309
    %362 = vmatprep.subr.mxu0 0.0
    %363 = vmatpush1.msra.mxu0 %v310
    %364 = vmatprep.subr.mxu0 0.0
    %365 = vmatpush1.msra.mxu0 %v311
    %366 = vmatprep.subr.mxu0 0.0
    %367 = vmatpush1.msra.mxu0 %v312
    %368 = vmatprep.subr.mxu0 0.0
    %369 = vmatpush1.msra.mxu0 %v313
    %370 = vmatprep.subr.mxu0 0.0
    %371 = vmatpush1.msra.mxu0 %v314
    %372 = vmatprep.subr.mxu0 0.0
    %373 = vmatpush1.msra.mxu0 %v315
    %374 = vmatprep.subr.mxu0 0.0
    %375 = vmatpush1.msra.mxu0 %v316
    %376 = vmatprep.subr.mxu0 0.0
    %377 = vmatpush1.msra.mxu0 %v317
    %378 = vmatprep.subr.mxu0 0.0
    %379 = vmatpush1.msra.mxu0 %v318
    %380 = vmatprep.subr.mxu0 0.0
    %381 = vmatpush1.msra.mxu0 0.0
    %382 = vmatprep.subr.mxu0 0.0
    %383 = vmatpush1.msra.mxu0 0.0
    %384 = vmatprep.subr.mxu0 0.0
    %385 = vmatpush1.msra.mxu0 0.0
    %386 = vmatprep.subr.mxu0 0.0
    %387 = vmatpush1.msra.mxu0 0.0
    %388 = vmatprep.subr.mxu0 0.0
    %389 = vmatpush1.msra.mxu0 0.0
    %390 = vmatprep.subr.mxu0 0.0
    %391 = vmatpush1.msra.mxu0 0.0
    %392 = vmatprep.subr.mxu0 0.0
    %393 = vmatpush1.msra.mxu0 0.0
    %394 = vmatprep.subr.mxu0 0.0
    %395 = vmatpush1.msra.mxu0 0.0
    %396 = vmatprep.mubr.f32.mxu0 %v327
    %397 = vmatmul.mubr.f32.gmra.mrb[0].mxu0 %v291
    %v398 = vpop.f32.mrb[0].mxu0
    %v399 = vadd.f32 %v324, %v398
    %v400 = vpop.f32.mrb[0].mxu0
    %401 = vmatprep.mubr.f32.mxu0 %v330
    %402 = vmatmul.mubr.f32.gmra.mrb[0].mxu0 %v293
    %v403 = vpop.f32.mrb[0].mxu0
    %v404 = vadd.f32 %v324, %v403
    %v405 = vpop.f32.mrb[0].mxu0
    %406 = vdwg.mxu0
    %v407 = vmax.f32 %v399, 0.0
    %v408 = vmax.f32 %v404, 0.0
    %v409 = vld [vmem:[%s0] sm:$0xff]
    %v410 = vld [vmem:[%s0 + $0x8] sm:$0xff]
    %v411 = vld [vmem:[%s10] sm:$0xff]
    %v412 = vld [vmem:[%s10 + $0x8] sm:$0xff]
    %v413 = vld [vmem:[%s11] sm:$0x1]
    %v415 = vlaneseq
    %v416 = vshrl.u32 %v415, 7
    %v417 = vsub.s32 0, %v416
    %v418 = vrot.slane %v413, %v417
    %vm420 = vcmask 130048
    %v422 = vsel %vm420, %v409, 0
    %v425 = vsel %vm420, %v410, 0
    %427 = vmatprep.subr.mxu0 0.0
    %428 = vmatpush1.msra.mxu0 %v411
    %429 = vmatprep.subr.mxu0 0.0
    %430 = vmatpush1.msra.mxu0 %v412
    %431 = vmatprep.subr.mxu0 0.0
    %432 = vmatpush1.msra.mxu0 0.0
    %433 = vmatprep.subr.mxu0 0.0
    %434 = vmatpush1.msra.mxu0 0.0
    %435 = vmatprep.subr.mxu0 0.0
    %436 = vmatpush1.msra.mxu0 0.0
    %437 = vmatprep.subr.mxu0 0.0
    %438 = vmatpush1.msra.mxu0 0.0
    %439 = vmatprep.subr.mxu0 0.0
    %440 = vmatpush1.msra.mxu0 0.0
    %441 = vmatprep.subr.mxu0 0.0
    %442 = vmatpush1.msra.mxu0 0.0
    %443 = vmatprep.subr.mxu0 0.0
    %444 = vmatpush1.msra.mxu0 0.0
    %445 = vmatprep.subr.mxu0 0.0
    %446 = vmatpush1.msra.mxu0 0.0
    %447 = vmatprep.subr.mxu0 0.0
    %448 = vmatpush1.msra.mxu0 0.0
    %449 = vmatprep.subr.mxu0 0.0
    %450 = vmatpush1.msra.mxu0 0.0
    %451 = vmatprep.subr.mxu0 0.0
    %452 = vmatpush1.msra.mxu0 0.0
    %453 = vmatprep.subr.mxu0 0.0
    %454 = vmatpush1.msra.mxu0 0.0
    %455 = vmatprep.subr.mxu0 0.0
    %456 = vmatpush1.msra.mxu0 0.0
    %457 = vmatprep.subr.mxu0 0.0
    %458 = vmatpush1.msra.mxu0 0.0
    %459 = vmatprep.subr.mxu0 0.0
    %460 = vmatpush1.msra.mxu0 0.0
    %461 = vmatprep.subr.mxu0 0.0
    %462 = vmatpush1.msra.mxu0 0.0
    %463 = vmatprep.subr.mxu0 0.0
    %464 = vmatpush1.msra.mxu0 0.0
    %465 = vmatprep.subr.mxu0 0.0
    %466 = vmatpush1.msra.mxu0 0.0
    %467 = vmatprep.subr.mxu0 0.0
    %468 = vmatpush1.msra.mxu0 0.0
    %469 = vmatprep.subr.mxu0 0.0
    %470 = vmatpush1.msra.mxu0 0.0
    %471 = vmatprep.subr.mxu0 0.0
    %472 = vmatpush1.msra.mxu0 0.0
    %473 = vmatprep.subr.mxu0 0.0
    %474 = vmatpush1.msra.mxu0 0.0
    %475 = vmatprep.subr.mxu0 0.0
    %476 = vmatpush1.msra.mxu0 0.0
    %477 = vmatprep.subr.mxu0 0.0
    %478 = vmatpush1.msra.mxu0 0.0
    %479 = vmatprep.subr.mxu0 0.0
    %480 = vmatpush1.msra.mxu0 0.0
    %481 = vmatprep.subr.mxu0 0.0
    %482 = vmatpush1.msra.mxu0 0.0
    %483 = vmatprep.subr.mxu0 0.0
    %484 = vmatpush1.msra.mxu0 0.0
    %485 = vmatprep.subr.mxu0 0.0
    %486 = vmatpush1.msra.mxu0 0.0
    %487 = vmatprep.subr.mxu0 0.0
    %488 = vmatpush1.msra.mxu0 0.0
    %489 = vmatprep.subr.mxu0 0.0
    %490 = vmatpush1.msra.mxu0 0.0
    %491 = vmatprep.mubr.f32.mxu0 0.0
    %492 = vmatmul.mubr.f32.gmra.mrb[0].mxu0 %v422
    %v493 = vpop.f32.mrb[0].mxu0
    %v494 = vadd.f32 %v418, %v493
    %v495 = vpop.f32.mrb[0].mxu0
    %496 = vmatprep.mubr.f32.mxu0 0.0
    %497 = vmatmul.mubr.f32.gmra.mrb[0].mxu0 %v425
    %v498 = vpop.f32.mrb[0].mxu0
    %v499 = vadd.f32 %v418, %v498
    %v500 = vpop.f32.mrb[0].mxu0
    %501 = vdwg.mxu0
    %v502 = vmax.f32 %v494, 0.0
    %v503 = vmax.f32 %v499, 0.0
    %v504 = vld [vmem:[%s12] sm:$0xff]
    %v505 = vld [vmem:[%s12 + $0x8] sm:$0xff]
    %v506 = vld [vmem:[%s12 + $0x10] sm:$0xff]
    %v507 = vld [vmem:[%s12 + $0x18] sm:$0xff]
    %v508 = vld [vmem:[%s12 + $0x20] sm:$0xff]
    %v509 = vld [vmem:[%s12 + $0x28] sm:$0xff]
    %v510 = vld [vmem:[%s12 + $0x30] sm:$0xff]
    %v511 = vld [vmem:[%s12 + $0x38] sm:$0xff]
    %v512 = vld [vmem:[%s13] sm:$0xff]
    %v513 = vld [vmem:[%s13 + $0x8] sm:$0xff]
    %v514 = vld [vmem:[%s13 + $0x10] sm:$0xff]
    %v515 = vld [vmem:[%s13 + $0x18] sm:$0xff]
    %v516 = vld [vmem:[%s13 + $0x20] sm:$0xff]
    %v517 = vld [vmem:[%s13 + $0x28] sm:$0xff]
    %v518 = vld [vmem:[%s13 + $0x30] sm:$0xff]
    %v519 = vld [vmem:[%s13 + $0x38] sm:$0xff]
    %v521 = vsel %vm207, %v289, 0
    %v524 = vsel %vm207, %v290, 0
    %526 = vmatprep.subr.mxu0 0.0
    %527 = vmatpush1.msra.mxu0 %v512
    %528 = vmatprep.subr.mxu0 0.0
    %529 = vmatpush1.msra.mxu0 %v513
    %530 = vmatprep.subr.mxu0 0.0
    %531 = vmatpush1.msra.mxu0 %v514
    %532 = vmatprep.subr.mxu0 0.0
    %533 = vmatpush1.msra.mxu0 %v515
    %534 = vmatprep.subr.mxu0 0.0
    %535 = vmatpush1.msra.mxu0 %v516
    %536 = vmatprep.subr.mxu0 0.0
    %537 = vmatpush1.msra.mxu0 %v517
    %538 = vmatprep.subr.mxu0 0.0
    %539 = vmatpush1.msra.mxu0 %v518
    %540 = vmatprep.subr.mxu0 0.0
    %541 = vmatpush1.msra.mxu0 %v519
    %542 = vmatprep.subr.mxu0 0.0
    %543 = vmatpush1.msra.mxu0 0.0
    %544 = vmatprep.subr.mxu0 0.0
    %545 = vmatpush1.msra.mxu0 0.0
    %546 = vmatprep.subr.mxu0 0.0
    %547 = vmatpush1.msra.mxu0 0.0
    %548 = vmatprep.subr.mxu0 0.0
    %549 = vmatpush1.msra.mxu0 0.0
    %550 = vmatprep.subr.mxu0 0.0
    %551 = vmatpush1.msra.mxu0 0.0
    %552 = vmatprep.subr.mxu0 0.0
    %553 = vmatpush1.msra.mxu0 0.0
    %554 = vmatprep.subr.mxu0 0.0
    %555 = vmatpush1.msra.mxu0 0.0
    %556 = vmatprep.subr.mxu0 0.0
    %557 = vmatpush1.msra.mxu0 0.0
    %558 = vmatprep.subr.mxu0 0.0
    %559 = vmatpush1.msra.mxu0 0.0
    %560 = vmatprep.subr.mxu0 0.0
    %561 = vmatpush1.msra.mxu0 0.0
    %562 = vmatprep.subr.mxu0 0.0
    %563 = vmatpush1.msra.mxu0 0.0
    %564 = vmatprep.subr.mxu0 0.0
    %565 = vmatpush1.msra.mxu0 0.0
    %566 = vmatprep.subr.mxu0 0.0
    %567 = vmatpush1.msra.mxu0 0.0
    %568 = vmatprep.subr.mxu0 0.0
    %569 = vmatpush1.msra.mxu0 0.0
    %570 = vmatprep.subr.mxu0 0.0
    %571 = vmatpush1.msra.mxu0 0.0
    %572 = vmatprep.subr.mxu0 0.0
    %573 = vmatpush1.msra.mxu0 0.0
    %574 = vmatprep.subr.mxu0 0.0
    %575 = vmatpush1.msra.mxu0 0.0
    %576 = vmatprep.subr.mxu0 0.0
    %577 = vmatpush1.msra.mxu0 0.0
    %578 = vmatprep.subr.mxu0 0.0
    %579 = vmatpush1.msra.mxu0 0.0
    %580 = vmatprep.subr.mxu0 0.0
    %581 = vmatpush1.msra.mxu0 0.0
    %582 = vmatprep.subr.mxu0 0.0
    %583 = vmatpush1.msra.mxu0 0.0
    %584 = vmatprep.subr.mxu0 0.0
    %585 = vmatpush1.msra.mxu0 0.0
    %586 = vmatprep.subr.mxu0 0.0
    %587 = vmatpush1.msra.mxu0 0.0
    %588 = vmatprep.subr.mxu0 0.0
    %589 = vmatpush1.msra.mxu0 0.0
    %590 = vmatprep.mubr.f32.mxu0 0.0
    %591 = vmatmul.mubr.f32.gmra.mrb[0].mxu0 %v521
    %v592 = vpop.f32.mrb[0].mxu0
    %v593 = vadd.f32 0.0, %v592
    %v594 = vpop.f32.mrb[0].mxu0
    %595 = vmatprep.mubr.f32.mxu0 0.0
    %596 = vmatmul.mubr.f32.gmra.mrb[0].mxu0 %v524
    %v597 = vpop.f32.mrb[0].mxu0
    %v598 = vadd.f32 0.0, %v597
    %v599 = vpop.f32.mrb[0].mxu0
    %600 = vdwg.mxu0
    %v602 = vsel %vm207, %v170, 0
    %v605 = vsel %vm207, %v171, 0
    %607 = vmatprep.subr.mxu0 0.0
    %608 = vmatpush1.msra.mxu0 %v504
    %609 = vmatprep.subr.mxu0 0.0
    %610 = vmatpush1.msra.mxu0 %v505
    %611 = vmatprep.subr.mxu0 0.0
    %612 = vmatpush1.msra.mxu0 %v506
    %613 = vmatprep.subr.mxu0 0.0
    %614 = vmatpush1.msra.mxu0 %v507
    %615 = vmatprep.subr.mxu0 0.0
    %616 = vmatpush1.msra.mxu0 %v508
    %617 = vmatprep.subr.mxu0 0.0
    %618 = vmatpush1.msra.mxu0 %v509
    %619 = vmatprep.subr.mxu0 0.0
    %620 = vmatpush1.msra.mxu0 %v510
    %621 = vmatprep.subr.mxu0 0.0
    %622 = vmatpush1.msra.mxu0 %v511
    %623 = vmatprep.subr.mxu0 0.0
    %624 = vmatpush1.msra.mxu0 0.0
    %625 = vmatprep.subr.mxu0 0.0
    %626 = vmatpush1.msra.mxu0 0.0
    %627 = vmatprep.subr.mxu0 0.0
    %628 = vmatpush1.msra.mxu0 0.0
    %629 = vmatprep.subr.mxu0 0.0
    %630 = vmatpush1.msra.mxu0 0.0
    %631 = vmatprep.subr.mxu0 0.0
    %632 = vmatpush1.msra.mxu0 0.0
    %633 = vmatprep.subr.mxu0 0.0
    %634 = vmatpush1.msra.mxu0 0.0
    %635 = vmatprep.subr.mxu0 0.0
    %636 = vmatpush1.msra.mxu0 0.0
    %637 = vmatprep.subr.mxu0 0.0
    %638 = vmatpush1.msra.mxu0 0.0
    %639 = vmatprep.subr.mxu0 0.0
    %640 = vmatpush1.msra.mxu0 0.0
    %641 = vmatprep.subr.mxu0 0.0
    %642 = vmatpush1.msra.mxu0 0.0
    %643 = vmatprep.subr.mxu0 0.0
    %644 = vmatpush1.msra.mxu0 0.0
    %645 = vmatprep.subr.mxu0 0.0
    %646 = vmatpush1.msra.mxu0 0.0
    %647 = vmatprep.subr.mxu0 0.0
    %648 = vmatpush1.msra.mxu0 0.0
    %649 = vmatprep.subr.mxu0 0.0
    %650 = vmatpush1.msra.mxu0 0.0
    %651 = vmatprep.subr.mxu0 0.0
    %652 = vmatpush1.msra.mxu0 0.0
    %653 = vmatprep.subr.mxu0 0.0
    %654 = vmatpush1.msra.mxu0 0.0
    %655 = vmatprep.subr.mxu0 0.0
    %656 = vmatpush1.msra.mxu0 0.0
    %657 = vmatprep.subr.mxu0 0.0
    %658 = vmatpush1.msra.mxu0 0.0
    %659 = vmatprep.subr.mxu0 0.0
    %660 = vmatpush1.msra.mxu0 0.0
    %661 = vmatprep.subr.mxu0 0.0
    %662 = vmatpush1.msra.mxu0 0.0
    %663 = vmatprep.subr.mxu0 0.0
    %664 = vmatpush1.msra.mxu0 0.0
    %665 = vmatprep.subr.mxu0 0.0
    %666 = vmatpush1.msra.mxu0 0.0
    %667 = vmatprep.subr.mxu0 0.0
    %668 = vmatpush1.msra.mxu0 0.0
    %669 = vmatprep.subr.mxu0 0.0
    %670 = vmatpush1.msra.mxu0 0.0
    %671 = vmatprep.mubr.f32.mxu0 0.0
    %672 = vmatmul.mubr.f32.gmra.mrb[0].mxu0 %v602
    %v673 = vpop.f32.mrb[0].mxu0
    %v674 = vadd.f32 %v593, %v673
    %v675 = vpop.f32.mrb[0].mxu0
    %676 = vmatprep.mubr.f32.mxu0 0.0
    %677 = vmatmul.mubr.f32.gmra.mrb[0].mxu0 %v605
    %v678 = vpop.f32.mrb[0].mxu0
    %v679 = vadd.f32 %v598, %v678
    %v680 = vpop.f32.mrb[0].mxu0
    %681 = vdwg.mxu0
    %v682 = vld [vmem:[%s14] sm:$0xff]
    %v683 = vld [vmem:[%s14 + $0x8] sm:$0xff]
    %v684 = vld [vmem:[%s14 + $0x10] sm:$0xff]
    %v685 = vld [vmem:[%s14 + $0x18] sm:$0xff]
    %v687 = vsel %vm88, %v407, 0
    %v690 = vsel %vm88, %v408, 0
    %692 = vmatprep.subr.mxu0 0.0
    %693 = vmatpush1.msra.mxu0 %v682
    %694 = vmatprep.subr.mxu0 0.0
    %695 = vmatpush1.msra.mxu0 %v683
    %696 = vmatprep.subr.mxu0 0.0
    %697 = vmatpush1.msra.mxu0 %v684
    %698 = vmatprep.subr.mxu0 0.0
    %699 = vmatpush1.msra.mxu0 %v685
    %700 = vmatprep.subr.mxu0 0.0
    %701 = vmatpush1.msra.mxu0 0.0
    %702 = vmatprep.subr.mxu0 0.0
    %703 = vmatpush1.msra.mxu0 0.0
    %704 = vmatprep.subr.mxu0 0.0
    %705 = vmatpush1.msra.mxu0 0.0
    %706 = vmatprep.subr.mxu0 0.0
    %707 = vmatpush1.msra.mxu0 0.0
    %708 = vmatprep.subr.mxu0 0.0
    %709 = vmatpush1.msra.mxu0 0.0
    %710 = vmatprep.subr.mxu0 0.0
    %711 = vmatpush1.msra.mxu0 0.0
    %712 = vmatprep.subr.mxu0 0.0
    %713 = vmatpush1.msra.mxu0 0.0
    %714 = vmatprep.subr.mxu0 0.0
    %715 = vmatpush1.msra.mxu0 0.0
    %716 = vmatprep.subr.mxu0 0.0
    %717 = vmatpush1.msra.mxu0 0.0
    %718 = vmatprep.subr.mxu0 0.0
    %719 = vmatpush1.msra.mxu0 0.0
    %720 = vmatprep.subr.mxu0 0.0
    %721 = vmatpush1.msra.mxu0 0.0
    %722 = vmatprep.subr.mxu0 0.0
    %723 = vmatpush1.msra.mxu0 0.0
    %724 = vmatprep.subr.mxu0 0.0
    %725 = vmatpush1.msra.mxu0 0.0
    %726 = vmatprep.subr.mxu0 0.0
    %727 = vmatpush1.msra.mxu0 0.0
    %728 = vmatprep.subr.mxu0 0.0
    %729 = vmatpush1.msra.mxu0 0.0
    %730 = vmatprep.subr.mxu0 0.0
    %731 = vmatpush1.msra.mxu0 0.0
    %732 = vmatprep.subr.mxu0 0.0
    %733 = vmatpush1.msra.mxu0 0.0
    %734 = vmatprep.subr.mxu0 0.0
    %735 = vmatpush1.msra.mxu0 0.0
    %736 = vmatprep.subr.mxu0 0.0
    %737 = vmatpush1.msra.mxu0 0.0
    %738 = vmatprep.subr.mxu0 0.0
    %739 = vmatpush1.msra.mxu0 0.0
    %740 = vmatprep.subr.mxu0 0.0
    %741 = vmatpush1.msra.mxu0 0.0
    %742 = vmatprep.subr.mxu0 0.0
    %743 = vmatpush1.msra.mxu0 0.0
    %744 = vmatprep.subr.mxu0 0.0
    %745 = vmatpush1.msra.mxu0 0.0
    %746 = vmatprep.subr.mxu0 0.0
    %747 = vmatpush1.msra.mxu0 0.0
    %748 = vmatprep.subr.mxu0 0.0
    %749 = vmatpush1.msra.mxu0 0.0
    %750 = vmatprep.subr.mxu0 0.0
    %751 = vmatpush1.msra.mxu0 0.0
    %752 = vmatprep.subr.mxu0 0.0
    %753 = vmatpush1.msra.mxu0 0.0
    %754 = vmatprep.subr.mxu0 0.0
    %755 = vmatpush1.msra.mxu0 0.0
    %756 = vmatprep.mubr.f32.mxu0 0.0
    %757 = vmatmul.mubr.f32.gmra.mrb[0].mxu0 %v687
    %v758 = vpop.f32.mrb[0].mxu0
    %v759 = vadd.f32 0.0, %v758
    %v760 = vpop.f32.mrb[0].mxu0
    %761 = vmatprep.mubr.f32.mxu0 0.0
    %762 = vmatmul.mubr.f32.gmra.mrb[0].mxu0 %v690
    %v763 = vpop.f32.mrb[0].mxu0
    %v764 = vadd.f32 0.0, %v763
    %v765 = vpop.f32.mrb[0].mxu0
    %766 = vdwg.mxu0
    %v767 = vadd.f32 %v674, %v759
    %v768 = vadd.f32 %v679, %v764
    %v769 = vld [vmem:[%s15] sm:$0xff]
    %v770 = vld [vmem:[%s15 + $0x8] sm:$0xff]
    %v771 = vld [vmem:[%s15 + $0x10] sm:$0xff]
    %v772 = vld [vmem:[%s15 + $0x18] sm:$0xff]
    %v774 = vsel %vm88, %v502, 0
    %v777 = vsel %vm88, %v503, 0
    %779 = vmatprep.subr.mxu0 0.0
    %780 = vmatpush1.msra.mxu0 %v769
    %781 = vmatprep.subr.mxu0 0.0
    %782 = vmatpush1.msra.mxu0 %v770
    %783 = vmatprep.subr.mxu0 0.0
    %784 = vmatpush1.msra.mxu0 %v771
    %785 = vmatprep.subr.mxu0 0.0
    %786 = vmatpush1.msra.mxu0 %v772
    %787 = vmatprep.subr.mxu0 0.0
    %788 = vmatpush1.msra.mxu0 0.0
    %789 = vmatprep.subr.mxu0 0.0
    %790 = vmatpush1.msra.mxu0 0.0
    %791 = vmatprep.subr.mxu0 0.0
    %792 = vmatpush1.msra.mxu0 0.0
    %793 = vmatprep.subr.mxu0 0.0
    %794 = vmatpush1.msra.mxu0 0.0
    %795 = vmatprep.subr.mxu0 0.0
    %796 = vmatpush1.msra.mxu0 0.0
    %797 = vmatprep.subr.mxu0 0.0
    %798 = vmatpush1.msra.mxu0 0.0
    %799 = vmatprep.subr.mxu0 0.0
    %800 = vmatpush1.msra.mxu0 0.0
    %801 = vmatprep.subr.mxu0 0.0
    %802 = vmatpush1.msra.mxu0 0.0
    %803 = vmatprep.subr.mxu0 0.0
    %804 = vmatpush1.msra.mxu0 0.0
    %805 = vmatprep.subr.mxu0 0.0
    %806 = vmatpush1.msra.mxu0 0.0
    %807 = vmatprep.subr.mxu0 0.0
    %808 = vmatpush1.msra.mxu0 0.0
    %809 = vmatprep.subr.mxu0 0.0
    %810 = vmatpush1.msra.mxu0 0.0
    %811 = vmatprep.subr.mxu0 0.0
    %812 = vmatpush1.msra.mxu0 0.0
    %813 = vmatprep.subr.mxu0 0.0
    %814 = vmatpush1.msra.mxu0 0.0
    %815 = vmatprep.subr.mxu0 0.0
    %816 = vmatpush1.msra.mxu0 0.0
    %817 = vmatprep.subr.mxu0 0.0
    %818 = vmatpush1.msra.mxu0 0.0
    %819 = vmatprep.subr.mxu0 0.0
    %820 = vmatpush1.msra.mxu0 0.0
    %821 = vmatprep.subr.mxu0 0.0
    %822 = vmatpush1.msra.mxu0 0.0
    %823 = vmatprep.subr.mxu0 0.0
    %824 = vmatpush1.msra.mxu0 0.0
    %825 = vmatprep.subr.mxu0 0.0
    %826 = vmatpush1.msra.mxu0 0.0
    %827 = vmatprep.subr.mxu0 0.0
    %828 = vmatpush1.msra.mxu0 0.0
    %829 = vmatprep.subr.mxu0 0.0
    %830 = vmatpush1.msra.mxu0 0.0
    %831 = vmatprep.subr.mxu0 0.0
    %832 = vmatpush1.msra.mxu0 0.0
    %833 = vmatprep.subr.mxu0 0.0
    %834 = vmatpush1.msra.mxu0 0.0
    %835 = vmatprep.subr.mxu0 0.0
    %836 = vmatpush1.msra.mxu0 0.0
    %837 = vmatprep.subr.mxu0 0.0
    %838 = vmatpush1.msra.mxu0 0.0
    %839 = vmatprep.subr.mxu0 0.0
    %840 = vmatpush1.msra.mxu0 0.0
    %841 = vmatprep.subr.mxu0 0.0
    %842 = vmatpush1.msra.mxu0 0.0
    %843 = vmatprep.mubr.f32.mxu0 0.0
    %844 = vmatmul.mubr.f32.gmra.mrb[0].mxu0 %v774
    %v845 = vpop.f32.mrb[0].mxu0
    %v846 = vadd.f32 0.0, %v845
    %v847 = vpop.f32.mrb[0].mxu0
    %848 = vmatprep.mubr.f32.mxu0 0.0
    %849 = vmatmul.mubr.f32.gmra.mrb[0].mxu0 %v777
    %v850 = vpop.f32.mrb[0].mxu0
    %v851 = vadd.f32 0.0, %v850
    %v852 = vpop.f32.mrb[0].mxu0
    %853 = vdwg.mxu0
    %v854 = vadd.f32 %v767, %v846
    %v855 = vadd.f32 %v768, %v851
    %v856 = vld [vmem:[%s16] sm:$0x1]
    %v858 = vlaneseq
    %v859 = vshrl.u32 %v858, 7
    %v860 = vsub.s32 0, %v859
    %v861 = vrot.slane %v856, %v860
    %v863 = vadd.f32 %v854, %v861
    %v864 = vadd.f32 %v855, %v861
    %865 = vst [vmem:[#allocation2] sm:$0xff] %v863
    %866 = vst [vmem:[#allocation2 + $0x8] sm:$0xff] %v864
    // Predicated region
    $region70: #{tpu_custom_call.1} parent=1 // pred_check
      _
    $region71: #{tpu_custom_call.1} parent=1 // pred_check_branch
      %868 = sbr.rel (0) target = $region73
    $region72: #{tpu_custom_call.1} parent=1 // pred_region
      %s870 = ssub.s32 256, 256
      %871 = vsyncadd [#allocation3], %s870
      %s872 = sshll.u32 [#allocation2], 4
      %s873 = int_to_ptr.vmem [resolvable:$true] %s872
      %878 = dma.vmem_to_hbm [thread:$0]  %s873, 256, %s17, [#allocation3], 128, 128, 8
    $region73: #{tpu_custom_call.1} parent=1 // pred_fallthru
      _
    // Predicated region
    $region74: #{tpu_custom_call.1} parent=1 // pred_check
      _
    $region75: #{tpu_custom_call.1} parent=1 // pred_check_branch
      %880 = sbr.rel (0) target = $region77
    $region76: #{tpu_custom_call.1} parent=1 // pred_region
      %881 = dma.done [#allocation3], 256
    $region77: #{tpu_custom_call.1} parent=1 // pred_fallthru
      _
    %882 = vsyncpa [#allocation3], 1

</llo_original>
